<compile_context>
chip_gen: v6e
topology: v6e:2x2x1
jax: 0.10.0
libtpu: 0.0.40
codegen_flags: <defaults>
</compile_context>

<pallas_src>
import functools

import jax
import jax.numpy as jnp
import numpy as np
from jax import lax
from jax.experimental import pallas as pl
from jax.experimental.pallas import tpu as pltpu

# Synthetic config, mirroring the module's __init__ dependencies.
ALL_EVENT_TYPES = [
    "basic info", "diagnosis", "medication", "procedure",
    "lab test", "imaging", "note", "discharge",
]
HIDDEN_SIZE = 32        # config.hidden_size
NUM_EVENTS = 8          # len(trajectory)
USE_EVENT_TYPE_EMBD = True
USE_EVENT_TIME_EMBD = True

_LANES = 128            # TPU vreg lane width
_TARGET_TILE_ROWS = 1024     # big tiles for HBM-bound v5e (85%+ of roofline)
_PAD_COPY_MAX_ROWS = 4096    # below this, a full pad copy costs ~O(1 MiB); accept it for
                             # fully aligned blocks.  Above it, rely on Pallas ragged blocks.


def _round_up(x, m):
    return ((x + m - 1) // m) * m


def _event_seq_encoder_kernel(table_ref, ifp_ref, gid_ref, delta_ref, content_ref,
                              out_ref, *, hidden, pack, num_types):
    """One grid step over a (tile_r, L) lane-dense slab of `pack` events per row.

    table_ref   : (pack*T, L) f32  block-diagonal tiled embedding table
    ifp_ref     : (kd, L)     f32  rows 0..pack-1: block-diag inv_freq, row pack: phase, rest 0
    gid_ref     : (tile_r, pack) i32  global one-hot column id = type_id + slot*T
    delta_ref   : (tile_r, kd)   f32  [day deltas per slot | 1.0 | 0...]
    content_ref : (tile_r, L)    f32  `pack` events' content vectors side-by-side per row
    out_ref     : (tile_r, L)    f32
    """
    tile_r = content_ref.shape[0]
    kt = pack * num_types

    base = content_ref[...]

    if USE_EVENT_TYPE_EMBD:
        # Tiny-table gather on the idle MXU: build a (tile_r, pack*T) one-hot over 32 lanes
        # (compares/selects on quarter-width vregs only), then one small f32 matmul against the
        # block-diagonal tiled table.
        gid = gid_ref[...]
        lane_kt = lax.broadcasted_iota(jnp.int32, (tile_r, kt), 1)
        gid_b = gid[:, 0:1]
        for p in range(1, pack):                       # slot select: 1 cmp + 1 sel per slot
            gid_b = jnp.where(lane_kt >= p * num_types, gid[:, p:p + 1], gid_b)
        onehot = (gid_b == lane_kt).astype(jnp.float32)
        type_emb = jnp.dot(onehot, table_ref[...],
                           preferred_element_type=jnp.float32,
                           precision=lax.Precision.HIGHEST)
        base = base + type_emb

    out = base
    if USE_EVENT_TIME_EMBD:
        # angle[row, lane] = delta[slot(lane)] * inv_freq[lane % H] + phase[lane % H]
        # computed as one tiny K=8 matmul (phase folded via the "ones" column) on the MXU.
        angle = jnp.dot(delta_ref[...], ifp_ref[...],
                        preferred_element_type=jnp.float32,
                        precision=lax.Precision.HIGHEST)
        # Even lanes: sin(d*f); odd lanes: sin(d*f + pi/2) == cos(d*f).  Single EUP sin.
        out = out + jnp.sin(angle)

    out_ref[...] = out

    if USE_EVENT_TIME_EMBD:
        # time_embeddings[0] = 0: global event 0 lives in packed row 0, lanes [0, hidden) of the
        # first grid tile only.  One 32-lane masked store instead of full-tile iotas + selects.
        @pl.when(pl.program_id(0) == 0)
        def _():
            out_ref[0:1, 0:hidden] = base[0:1, 0:hidden]


@jax.jit
def event_sequence_encoder(content_embeddings, event_table, type_ids, delta_days):
    n, h = content_embeddings.shape
    t = event_table.shape[0]
    if n == 0:
        # Module returns zeros(1, hidden) for an empty trajectory.
        return jnp.zeros((1, h), jnp.float32)

    # Lane-dense packing: `pack` events side-by-side on the 128-lane axis.
    pack = _LANES // h if (h < _LANES and _LANES % h == 0) else 1
    L = pack * h
    kt = pack * t
    kd = max(8, pack + 1)                    # K of the delta/phase matmul

    r = -(-n // pack)                        # packed rows needed

    # Tile sizing: big tiles for mem-bound v5e, and >= 2 grid steps (when r > 8) so both v7x
    # TensorCores get work under dimension_semantics=("parallel",).
    if r <= 8:
        tile_r = 8
    elif r <= 2 * _TARGET_TILE_ROWS:
        tile_r = _round_up(-(-r // 2), 8)
    else:
        tile_r = _TARGET_TILE_ROWS
    grid_rows = -(-r // tile_r)

    # Row padding policy: for small inputs the whole-array pad copy is O(1 MiB) and buys fully
    # aligned blocks; for large inputs skip it and let Pallas mask the ragged last block (OOB
    # input reads are discarded with the masked output writeback).
    if r <= _PAD_COPY_MAX_ROWS:
        r_pad = grid_rows * tile_r
    else:
        r_pad = r
    n_pack = r_pad * pack

    # --- content: (N, H) -> (r_pad, L) is a free row-major reshape when no padding is needed ---
    content = content_embeddings.astype(jnp.float32)
    if n_pack != n:
        # TODO(synk): jnp.pad here is a whole-array HBM copy; it is only taken for small inputs
        # (copy ~O(1 MiB)) or when N % pack != 0 (<= pack-1 extra rows).
        content = jnp.pad(content, ((0, n_pack - n), (0, 0)))
    content2 = content.reshape(r_pad, L)

    # --- tiny per-event metadata: type ids -> global one-hot ids, deltas -> augmented LHS ---
    tid = type_ids.astype(jnp.int32)
    dts = delta_days.astype(jnp.float32)
    if n_pack != n:
        tid = jnp.pad(tid, (0, n_pack - n))
        dts = jnp.pad(dts, (0, n_pack - n))
    gid = tid.reshape(r_pad, pack) + jnp.arange(pack, dtype=jnp.int32)[None, :] * t
    dts2 = dts.reshape(r_pad, pack)
    delta_aug = jnp.concatenate(
        [dts2,
         jnp.ones((r_pad, 1), jnp.float32),
         jnp.zeros((r_pad, kd - pack - 1), jnp.float32)], axis=1)     # (r_pad, kd)

    # --- MXU right-hand sides ---
    # Block-diagonal tiled embedding table: block (p, p) = event_table.
    table_bd = jnp.kron(jnp.eye(pack, dtype=jnp.float32),
                        event_table.astype(jnp.float32))               # (pack*T, L)
    # inv_freq / phase depend only on H -> trace-time numpy constants (no exp in the kernel).
    j = np.arange(h)
    inv_freq = np.exp(-(np.log(10000.0) * 2.0 * (j // 2)) / float(h)).astype(np.float32)
    phase = np.where(j % 2 == 0, 0.0, np.pi / 2.0).astype(np.float32)
    ifp_np = np.zeros((kd, L), np.float32)
    for p in range(pack):
        ifp_np[p, p * h:(p + 1) * h] = inv_freq
    ifp_np[pack, :] = np.tile(phase, pack)
    ifp = jnp.asarray(ifp_np)                                          # (kd, L)

    kernel = functools.partial(_event_seq_encoder_kernel,
                               hidden=h, pack=pack, num_types=t)

    out = pl.pallas_call(
        kernel,
        out_shape=jax.ShapeDtypeStruct((r_pad, L), jnp.float32),
        grid=(grid_rows,),
        in_specs=[
            pl.BlockSpec((kt, L), lambda i: (0, 0)),          # block-diag type table
            pl.BlockSpec((kd, L), lambda i: (0, 0)),          # block-diag inv_freq + phase
            pl.BlockSpec((tile_r, pack), lambda i: (i, 0)),   # global one-hot ids (i32)
            pl.BlockSpec((tile_r, kd), lambda i: (i, 0)),     # [deltas | 1 | 0]
            pl.BlockSpec((tile_r, L), lambda i: (i, 0)),      # content embeddings
        ],
        out_specs=pl.BlockSpec((tile_r, L), lambda i: (i, 0)),
        compiler_params=pltpu.CompilerParams(
            dimension_semantics=("parallel",)),               # shard rows across v7x's 2 TCs
        cost_estimate=pl.CostEstimate(
            flops=grid_rows * tile_r * L * (2 * (kt + kd) + 3),
            transcendentals=grid_rows * tile_r * L,
            bytes_accessed=4 * (2 * r_pad * L + r_pad * (pack + kd) + (kt + kd) * L)),
    )(table_bd, ifp, gid, delta_aug, content2)

    out = out.reshape(r_pad * pack, h)
    if r_pad * pack != n:
        out = out[:n]
    return out


def _reference(content, table, type_ids, delta):
    """Pure-numpy reference mirroring the PyTorch forward semantics."""
    n, h = content.shape
    out = content.copy()
    if USE_EVENT_TYPE_EMBD:
        out = out + table[type_ids]
    if USE_EVENT_TIME_EMBD:
        j = np.arange(h)
        inv_freq = np.exp(-(np.log(10000.0) * 2.0 * (j // 2)) / float(h))
        angle = np.asarray(delta)[:, None] * inv_freq[None, :]
        time_emb = np.where(j % 2 == 0, np.sin(angle), np.cos(angle)).astype(np.float32)
        time_emb[0] = 0.0
        out = out + time_emb
    return out


if __name__ == "__main__":
    key = jax.random.PRNGKey(0)
    k_content, k_table = jax.random.split(key)

    # Synthetic "trajectory" of NUM_EVENTS events: (event_type, date offset in days).
    trajectory = [
        {"event_type": ALL_EVENT_TYPES[i % len(ALL_EVENT_TYPES)], "date": float(3 * i)}
        for i in range(NUM_EVENTS)
    ]
    date_origin = 0.0

    # Per-event 'cls' content embeddings, concatenated -> (N, H).
    content = jax.random.normal(k_content, (NUM_EVENTS, HIDDEN_SIZE), dtype=jnp.float32)
    # nn.Embedding(len(ALL_EVENT_TYPES), hidden_size) weight, deterministically initialized.
    event_table = jax.random.normal(
        k_table, (len(ALL_EVENT_TYPES), HIDDEN_SIZE), dtype=jnp.float32)

    # Glue: build type ids and day deltas from the trajectory (host-side list handling).
    type_ids = jnp.array(
        [ALL_EVENT_TYPES.index(ev["event_type"]) for ev in trajectory], dtype=jnp.int32)
    delta_days = jnp.array(
        [0.0 if ev["event_type"] == "basic info" else (ev["date"] - date_origin)
         for ev in trajectory],
        dtype=jnp.float32)

    out = event_sequence_encoder(content, event_table, type_ids, delta_days)
    out = jax.block_until_ready(out)

    ref = _reference(np.asarray(content), np.asarray(event_table),
                     np.asarray(type_ids), np.asarray(delta_days))
    np.testing.assert_allclose(np.asarray(out), ref, rtol=1e-4, atol=1e-4)

    print("KERNEL_OK")
</pallas_src>

<mosaic_0001>
module attributes {stable_mosaic.version = 11 : i64} {
  func.func @_event_seq_encoder_kernel(%arg0: i32, %arg1: memref<32x128xf32, #tpu.memory_space<vmem>>, %arg2: memref<8x128xf32, #tpu.memory_space<vmem>>, %arg3: memref<8x4xi32, #tpu.memory_space<vmem>>, %arg4: memref<8x8xf32, #tpu.memory_space<vmem>>, %arg5: memref<8x128xf32, #tpu.memory_space<vmem>>, %arg6: memref<8x128xf32, #tpu.memory_space<vmem>>) attributes {dimension_semantics = [#tpu.dimension_semantics<parallel>], iteration_bounds = array<i64: 1>, scalar_prefetch = 0 : i64, scratch_operands = 0 : i64, tpu.core_type = #tpu.core_type<tc>, window_params = [{pipeline_mode = #tpu.pipeline_mode<synchronous>, transform_indices = @transform_0, window_bounds = array<i64: 32, 128>}, {pipeline_mode = #tpu.pipeline_mode<synchronous>, transform_indices = @transform_1, window_bounds = array<i64: 8, 128>}, {transform_indices = @transform_2, window_bounds = array<i64: 8, 4>}, {transform_indices = @transform_3, window_bounds = array<i64: 8, 8>}, {transform_indices = @transform_4, window_bounds = array<i64: 8, 128>}, {transform_indices = @transform_5, window_bounds = array<i64: 8, 128>}]} {
    %c0 = arith.constant 0 : index
    %c0_0 = arith.constant 0 : index
    %0 = vector.load %arg5[%c0, %c0_0] : memref<8x128xf32, #tpu.memory_space<vmem>>, vector<8x128xf32>
    %c0_1 = arith.constant 0 : index
    %c0_2 = arith.constant 0 : index
    %1 = vector.load %arg3[%c0_1, %c0_2] : memref<8x4xi32, #tpu.memory_space<vmem>>, vector<8x4xi32>
    %2 = tpu.iota {dimensions = array<i32: 1>} : vector<8x32xi32>
    %3 = vector.extract_strided_slice %1 {offsets = [0, 0], sizes = [8, 1], strides = [1, 1]} : vector<8x4xi32> to vector<8x1xi32>
    %c8_i32 = arith.constant 8 : i32
    %4 = vector.broadcast %c8_i32 : i32 to vector<8x32xi32>
    %5 = arith.cmpi sge, %2, %4 : vector<8x32xi32>
    %6 = vector.extract_strided_slice %1 {offsets = [0, 1], sizes = [8, 1], strides = [1, 1]} : vector<8x4xi32> to vector<8x1xi32>
    %7 = vector.shape_cast %6 : vector<8x1xi32> to vector<8x1xi32>
    %8 = vector.broadcast %7 : vector<8x1xi32> to vector<8x32xi32>
    %9 = vector.shape_cast %3 : vector<8x1xi32> to vector<8x1xi32>
    %10 = vector.broadcast %9 : vector<8x1xi32> to vector<8x32xi32>
    %11 = arith.select %5, %8, %10 : vector<8x32xi1>, vector<8x32xi32>
    %c16_i32 = arith.constant 16 : i32
    %12 = vector.broadcast %c16_i32 : i32 to vector<8x32xi32>
    %13 = arith.cmpi sge, %2, %12 : vector<8x32xi32>
    %14 = vector.extract_strided_slice %1 {offsets = [0, 2], sizes = [8, 1], strides = [1, 1]} : vector<8x4xi32> to vector<8x1xi32>
    %15 = vector.shape_cast %14 : vector<8x1xi32> to vector<8x1xi32>
    %16 = vector.broadcast %15 : vector<8x1xi32> to vector<8x32xi32>
    %17 = arith.select %13, %16, %11 : vector<8x32xi1>, vector<8x32xi32>
    %c24_i32 = arith.constant 24 : i32
    %18 = vector.broadcast %c24_i32 : i32 to vector<8x32xi32>
    %19 = arith.cmpi sge, %2, %18 : vector<8x32xi32>
    %20 = vector.extract_strided_slice %1 {offsets = [0, 3], sizes = [8, 1], strides = [1, 1]} : vector<8x4xi32> to vector<8x1xi32>
    %21 = vector.shape_cast %20 : vector<8x1xi32> to vector<8x1xi32>
    %22 = vector.broadcast %21 : vector<8x1xi32> to vector<8x32xi32>
    %23 = arith.select %19, %22, %17 : vector<8x32xi1>, vector<8x32xi32>
    %24 = arith.cmpi eq, %23, %2 : vector<8x32xi32>
    %25 = arith.extui %24 : vector<8x32xi1> to vector<8x32xi32>
    %26 = arith.sitofp %25 : vector<8x32xi32> to vector<8x32xf32>
    %c0_3 = arith.constant 0 : index
    %c0_4 = arith.constant 0 : index
    %27 = vector.load %arg1[%c0_3, %c0_4] : memref<32x128xf32, #tpu.memory_space<vmem>>, vector<32x128xf32>
    %cst = arith.constant dense<0.000000e+00> : vector<8x128xf32>
    %28 = tpu.matmul %26, %27, %cst {dimension_numbers = #tpu.dot_dimension_numbers<[1], [0], [0], [1], [0, 0, 1, 1], [], []>, precision = #tpu.contract_precision<fp32>} : vector<8x32xf32>, vector<32x128xf32>, vector<8x128xf32> -> vector<8x128xf32>
    %29 = arith.addf %0, %28 : vector<8x128xf32>
    %c0_5 = arith.constant 0 : index
    %c0_6 = arith.constant 0 : index
    %30 = vector.load %arg4[%c0_5, %c0_6] : memref<8x8xf32, #tpu.memory_space<vmem>>, vector<8x8xf32>
    %c0_7 = arith.constant 0 : index
    %c0_8 = arith.constant 0 : index
    %31 = vector.load %arg2[%c0_7, %c0_8] : memref<8x128xf32, #tpu.memory_space<vmem>>, vector<8x128xf32>
    %cst_9 = arith.constant dense<0.000000e+00> : vector<8x128xf32>
    %32 = tpu.matmul %30, %31, %cst_9 {dimension_numbers = #tpu.dot_dimension_numbers<[1], [0], [0], [1], [0, 0, 1, 1], [], []>, precision = #tpu.contract_precision<fp32>} : vector<8x8xf32>, vector<8x128xf32>, vector<8x128xf32> -> vector<8x128xf32>
    %33 = math.sin %32 : vector<8x128xf32>
    %34 = arith.addf %29, %33 : vector<8x128xf32>
    %c0_10 = arith.constant 0 : index
    %c0_11 = arith.constant 0 : index
    %35 = vector.load %arg6[%c0_10, %c0_11] : memref<8x128xf32, #tpu.memory_space<vmem>>, vector<8x128xf32>
    tpu.vector_store %arg6[%c0_10, %c0_11], %34 {strides = array<i32>} : memref<8x128xf32, #tpu.memory_space<vmem>>, vector<8x128xf32>,
    %c0_i32 = arith.constant 0 : i32
    %36 = arith.cmpi eq, %arg0, %c0_i32 : i32
    %37 = arith.extui %36 : i1 to i32
    %c0_i32_12 = arith.constant 0 : i32
    %38 = arith.cmpi ne, %37, %c0_i32_12 : i32
    scf.if %38 {
      %39 = vector.extract_strided_slice %29 {offsets = [0, 0], sizes = [1, 32], strides = [1, 1]} : vector<8x128xf32> to vector<1x32xf32>
      %c0_13 = arith.constant 0 : index
      %c0_14 = arith.constant 0 : index
      %40 = vector.load %arg6[%c0_13, %c0_14] : memref<8x128xf32, #tpu.memory_space<vmem>>, vector<1x32xf32>
      tpu.vector_store %arg6[%c0_13, %c0_14], %39 {strides = array<i32>} : memref<8x128xf32, #tpu.memory_space<vmem>>, vector<1x32xf32>,
    } else {
    }
    return
  }
  func.func @transform_0(%arg0: i32) -> (i32, i32) {
    %c0_i32 = arith.constant 0 : i32
    %c0_i32_0 = arith.constant 0 : i32
    %c0_i32_1 = arith.constant 0 : i32
    return %c0_i32, %c0_i32_0 : i32, i32
  }
  func.func @transform_1(%arg0: i32) -> (i32, i32) {
    %c0_i32 = arith.constant 0 : i32
    %c0_i32_0 = arith.constant 0 : i32
    %c0_i32_1 = arith.constant 0 : i32
    return %c0_i32, %c0_i32_0 : i32, i32
  }
  func.func @transform_2(%arg0: i32) -> (i32, i32) {
    %c0_i32 = arith.constant 0 : i32
    %c0_i32_0 = arith.constant 0 : i32
    return %arg0, %c0_i32 : i32, i32
  }
  func.func @transform_3(%arg0: i32) -> (i32, i32) {
    %c0_i32 = arith.constant 0 : i32
    %c0_i32_0 = arith.constant 0 : i32
    return %arg0, %c0_i32 : i32, i32
  }
  func.func @transform_4(%arg0: i32) -> (i32, i32) {
    %c0_i32 = arith.constant 0 : i32
    %c0_i32_0 = arith.constant 0 : i32
    return %arg0, %c0_i32 : i32, i32
  }
  func.func @transform_5(%arg0: i32) -> (i32, i32) {
    %c0_i32 = arith.constant 0 : i32
    %c0_i32_0 = arith.constant 0 : i32
    return %arg0, %c0_i32 : i32, i32
  }
}

</mosaic_0001>

<llo_original>
// kernel: event_sequence_encoder.1
$region0: #{event_sequence_encoder.1}
  #allocation0 [shape = 'u32[]', space=smem, size = 0x4, offset = 0x4, fixed_abs, tag = 'smem constant byte address 0x4 - core index']
  #allocation1 [shape = 'u32[144,128]{1,0:T(1,128)}', space=vmem, size = 0x12000, scoped, tag = 'internal scratch']
  %s0 = inlined_call_operand.vmem [shape: f32[32,128], index: 0, kind: input, shape index: {}]
  %s1 = inlined_call_operand.vmem [shape: f32[8,128], index: 1, kind: input, shape index: {}]
  %s2 = inlined_call_operand.vmem [shape: s32[8,4], index: 2, kind: input, shape index: {}]
  %s3 = inlined_call_operand.vmem [shape: f32[8,8], index: 3, kind: input, shape index: {}]
  %s4 = inlined_call_operand.vmem [shape: f32[8,128], index: 4, kind: input, shape index: {}]
  %s5 = inlined_call_operand.vmem [shape: f32[8,128], index: 5, kind: output, shape index: {}]
  %s6 = sld [smem:[#allocation0]]
  $region34: #{event_sequence_encoder.1} parent=0
    _
  %s8 = ssub.s32 1, %s6
  %s9 = scalar_select 0, %s8, %s6
  // Predicated region
  $region2: #{event_sequence_encoder.1} parent=0 // pred_check
    _
  $region3: #{event_sequence_encoder.1} parent=0 // pred_check_branch
    %11 = sbr.rel (0) target = $region5
  $region4: #{event_sequence_encoder.1} parent=0 // pred_region
    _
  $region5: #{event_sequence_encoder.1} parent=0 // pred_fallthru
    _
  // Predicated region
  $region6: #{event_sequence_encoder.1} parent=0 // pred_check
    _
  $region7: #{event_sequence_encoder.1} parent=0 // pred_check_branch
    %13 = sbr.rel (0) target = $region9
  $region8: #{event_sequence_encoder.1} parent=0 // pred_region
    _
  $region9: #{event_sequence_encoder.1} parent=0 // pred_fallthru
    _
  // Predicated region
  $region10: #{event_sequence_encoder.1} parent=0 // pred_check
    _
  $region11: #{event_sequence_encoder.1} parent=0 // pred_check_branch
    %15 = sbr.rel (0) target = $region13
  $region12: #{event_sequence_encoder.1} parent=0 // pred_region
    _
  $region13: #{event_sequence_encoder.1} parent=0 // pred_fallthru
    _
  // Predicated region
  $region14: #{event_sequence_encoder.1} parent=0 // pred_check
    _
  $region15: #{event_sequence_encoder.1} parent=0 // pred_check_branch
    %17 = sbr.rel (0) target = $region17
  $region16: #{event_sequence_encoder.1} parent=0 // pred_region
    _
  $region17: #{event_sequence_encoder.1} parent=0 // pred_fallthru
    _
  // Predicated region
  $region18: #{event_sequence_encoder.1} parent=0 // pred_check
    _
  $region19: #{event_sequence_encoder.1} parent=0 // pred_check_branch
    %19 = sbr.rel (0) target = $region21
  $region20: #{event_sequence_encoder.1} parent=0 // pred_region
    _
  $region21: #{event_sequence_encoder.1} parent=0 // pred_fallthru
    _
  %v20 = vld [vmem:[%s4] sm:$0xff]
  %v21 = vld [vmem:[%s2] sm:$0xff]
  %v22 = vlaneseq
  %v23 = vand.u32 %v22, 127
  %vm24 = vcmp.ge.s32.totalorder %v23, 8
  %25 = vset.pattern.permute.xlu0 1
  %26 = vperm.xlu0 %25, %v21
  %v27 = vpop.permute.xlu0 %26
  %28 = vset.pattern.permute.xlu0 0
  %29 = vperm.xlu0 %28, %v21
  %v30 = vpop.permute.xlu0 %29
  %v31 = vsel %vm24, %v27, %v30
  %vm32 = vcmp.ge.s32.totalorder %v23, 16
  %33 = vset.pattern.permute.xlu0 2
  %34 = vperm.xlu0 %33, %v21
  %v35 = vpop.permute.xlu0 %34
  %v36 = vsel %vm32, %v35, %v31
  %vm37 = vcmp.ge.s32.totalorder %v23, 24
  %38 = vset.pattern.permute.xlu0 3
  %39 = vperm.xlu0 %38, %v21
  %v40 = vpop.permute.xlu0 %39
  %v41 = vsel %vm37, %v40, %v36
  %vm42 = vcmp.eq.s32.totalorder %v41, %v23
  %v43 = vsel %vm42, 1, 0
  %v44 = vcvt.s32.f32 %v43
  %v45 = vld [vmem:[%s0] sm:$0xff]
  %v46 = vld [vmem:[%s0 + $0x8] sm:$0xff]
  %v47 = vld [vmem:[%s0 + $0x10] sm:$0xff]
  %v48 = vld [vmem:[%s0 + $0x18] sm:$0xff]
  %vm49 = vcmask 261120
  %v51 = vsel %vm49, %v44, 0
  %53 = vmatprep.subr.mxu0 0.0
  %54 = vmatpush1.msra.mxu0 0.0
  %55 = vmatprep.subr.mxu0 0.0
  %56 = vmatpush1.msra.mxu0 0.0
  %57 = vmatprep.subr.mxu0 0.0
  %58 = vmatpush1.msra.mxu0 0.0
  %59 = vmatprep.subr.mxu0 0.0
  %60 = vmatpush1.msra.mxu0 0.0
  %61 = vmatprep.subr.mxu0 0.0
  %62 = vmatpush1.msra.mxu0 0.0
  %63 = vmatprep.subr.mxu0 0.0
  %64 = vmatpush1.msra.mxu0 0.0
  %65 = vmatprep.subr.mxu0 0.0
  %66 = vmatpush1.msra.mxu0 0.0
  %67 = vmatprep.subr.mxu0 0.0
  %68 = vmatpush1.msra.mxu0 0.0
  %69 = vmatprep.subr.mxu0 0.0
  %70 = vmatpush1.msra.mxu0 0.0
  %71 = vmatprep.subr.mxu0 0.0
  %72 = vmatpush1.msra.mxu0 0.0
  %73 = vmatprep.subr.mxu0 0.0
  %74 = vmatpush1.msra.mxu0 0.0
  %75 = vmatprep.subr.mxu0 0.0
  %76 = vmatpush1.msra.mxu0 0.0
  %77 = vmatprep.subr.mxu0 0.0
  %v78 = vand.u32 %v48, 4294901760
  %79 = vmatpush1.msra.mxu0 %v78
  %80 = vmatprep.subr.mxu0 0.0
  %v81 = vand.u32 %v47, 4294901760
  %82 = vmatpush1.msra.mxu0 %v81
  %83 = vmatprep.subr.mxu0 0.0
  %v84 = vand.u32 %v46, 4294901760
  %85 = vmatpush1.msra.mxu0 %v84
  %86 = vmatprep.subr.mxu0 0.0
  %v87 = vand.u32 %v45, 4294901760
  %88 = vmatpush1.msra.mxu0 %v87
  %89 = vmatprep.subr.mxu0 0.0
  %90 = vmatpush2.msra.mxu0 0.0
  %91 = vmatprep.subr.mxu0 0.0
  %92 = vmatpush2.msra.mxu0 0.0
  %93 = vmatprep.subr.mxu0 0.0
  %94 = vmatpush2.msra.mxu0 0.0
  %95 = vmatprep.subr.mxu0 0.0
  %96 = vmatpush2.msra.mxu0 0.0
  %97 = vmatprep.subr.mxu0 0.0
  %98 = vmatpush2.msra.mxu0 0.0
  %99 = vmatprep.subr.mxu0 0.0
  %100 = vmatpush2.msra.mxu0 0.0
  %101 = vmatprep.subr.mxu0 0.0
  %102 = vmatpush2.msra.mxu0 0.0
  %103 = vmatprep.subr.mxu0 0.0
  %104 = vmatpush2.msra.mxu0 0.0
  %105 = vmatprep.subr.mxu0 0.0
  %106 = vmatpush2.msra.mxu0 0.0
  %107 = vmatprep.subr.mxu0 0.0
  %108 = vmatpush2.msra.mxu0 0.0
  %109 = vmatprep.subr.mxu0 0.0
  %110 = vmatpush2.msra.mxu0 0.0
  %111 = vmatprep.subr.mxu0 0.0
  %112 = vmatpush2.msra.mxu0 0.0
  %113 = vmatprep.subr.mxu0 0.0
  %114 = vmatpush2.msra.mxu0 0.0
  %115 = vmatprep.subr.mxu0 0.0
  %116 = vmatpush2.msra.mxu0 0.0
  %117 = vmatprep.subr.mxu0 0.0
  %118 = vmatpush2.msra.mxu0 0.0
  %119 = vmatprep.subr.mxu0 0.0
  %120 = vmatpush2.msra.mxu0 0.0
  %121 = vmatprep.mubr.f32.mxu0 0.0
  %v122 = vand.u32 %v51, 4294901760
  %v123 = vsub.f32 %v51, %v122
  %v124 = vand.u32 %v123, 4294901760
  %v125 = vsub.f32 %v123, %v124
  %v126 = vand.u32 %v125, 4294901760
  %127 = vmatmul.mubr.f32.gmra.mxu0 %v126
  %v128 = vpop.f32.mrf.mxu0
  %v129 = vadd.f32 0.0, %v128
  %v130 = vpop.f32.mrf.mxu0
  %131 = vdwg.mxu0
  %132 = vmatprep.subr.mxu0 0.0
  %133 = vmatpush1.msra.mxu0 0.0
  %134 = vmatprep.subr.mxu0 0.0
  %135 = vmatpush1.msra.mxu0 0.0
  %136 = vmatprep.subr.mxu0 0.0
  %137 = vmatpush1.msra.mxu0 0.0
  %138 = vmatprep.subr.mxu0 0.0
  %139 = vmatpush1.msra.mxu0 0.0
  %140 = vmatprep.subr.mxu0 0.0
  %141 = vmatpush1.msra.mxu0 0.0
  %142 = vmatprep.subr.mxu0 0.0
  %143 = vmatpush1.msra.mxu0 0.0
  %144 = vmatprep.subr.mxu0 0.0
  %145 = vmatpush1.msra.mxu0 0.0
  %146 = vmatprep.subr.mxu0 0.0
  %147 = vmatpush1.msra.mxu0 0.0
  %148 = vmatprep.subr.mxu0 0.0
  %149 = vmatpush1.msra.mxu0 0.0
  %150 = vmatprep.subr.mxu0 0.0
  %151 = vmatpush1.msra.mxu0 0.0
  %152 = vmatprep.subr.mxu0 0.0
  %153 = vmatpush1.msra.mxu0 0.0
  %154 = vmatprep.subr.mxu0 0.0
  %155 = vmatpush1.msra.mxu0 0.0
  %156 = vmatprep.subr.mxu0 0.0
  %v157 = vand.u32 %v48, 4294901760
  %v158 = vsub.f32 %v48, %v157
  %v159 = vand.u32 %v158, 4294901760
  %v160 = vsub.f32 %v158, %v159
  %v161 = vand.u32 %v160, 4294901760
  %162 = vmatpush1.msra.mxu0 %v161
  %163 = vmatprep.subr.mxu0 0.0
  %v164 = vand.u32 %v47, 4294901760
  %v165 = vsub.f32 %v47, %v164
  %v166 = vand.u32 %v165, 4294901760
  %v167 = vsub.f32 %v165, %v166
  %v168 = vand.u32 %v167, 4294901760
  %169 = vmatpush1.msra.mxu0 %v168
  %170 = vmatprep.subr.mxu0 0.0
  %v171 = vand.u32 %v46, 4294901760
  %v172 = vsub.f32 %v46, %v171
  %v173 = vand.u32 %v172, 4294901760
  %v174 = vsub.f32 %v172, %v173
  %v175 = vand.u32 %v174, 4294901760
  %176 = vmatpush1.msra.mxu0 %v175
  %177 = vmatprep.subr.mxu0 0.0
  %v178 = vand.u32 %v45, 4294901760
  %v179 = vsub.f32 %v45, %v178
  %v180 = vand.u32 %v179, 4294901760
  %v181 = vsub.f32 %v179, %v180
  %v182 = vand.u32 %v181, 4294901760
  %183 = vmatpush1.msra.mxu0 %v182
  %184 = vmatprep.subr.mxu0 0.0
  %185 = vmatpush2.msra.mxu0 0.0
  %186 = vmatprep.subr.mxu0 0.0
  %187 = vmatpush2.msra.mxu0 0.0
  %188 = vmatprep.subr.mxu0 0.0
  %189 = vmatpush2.msra.mxu0 0.0
  %190 = vmatprep.subr.mxu0 0.0
  %191 = vmatpush2.msra.mxu0 0.0
  %192 = vmatprep.subr.mxu0 0.0
  %193 = vmatpush2.msra.mxu0 0.0
  %194 = vmatprep.subr.mxu0 0.0
  %195 = vmatpush2.msra.mxu0 0.0
  %196 = vmatprep.subr.mxu0 0.0
  %197 = vmatpush2.msra.mxu0 0.0
  %198 = vmatprep.subr.mxu0 0.0
  %199 = vmatpush2.msra.mxu0 0.0
  %200 = vmatprep.subr.mxu0 0.0
  %201 = vmatpush2.msra.mxu0 0.0
  %202 = vmatprep.subr.mxu0 0.0
  %203 = vmatpush2.msra.mxu0 0.0
  %204 = vmatprep.subr.mxu0 0.0
  %205 = vmatpush2.msra.mxu0 0.0
  %206 = vmatprep.subr.mxu0 0.0
  %207 = vmatpush2.msra.mxu0 0.0
  %208 = vmatprep.subr.mxu0 0.0
  %209 = vmatpush2.msra.mxu0 0.0
  %210 = vmatprep.subr.mxu0 0.0
  %211 = vmatpush2.msra.mxu0 0.0
  %212 = vmatprep.subr.mxu0 0.0
  %213 = vmatpush2.msra.mxu0 0.0
  %214 = vmatprep.subr.mxu0 0.0
  %215 = vmatpush2.msra.mxu0 0.0
  %216 = vmatprep.mubr.f32.mxu0 0.0
  %v217 = vand.u32 %v51, 4294901760
  %218 = vmatmul.mubr.f32.gmra.mxu0 %v217
  %v219 = vpop.f32.mrf.mxu0
  %v220 = vadd.f32 %v129, %v219
  %v221 = vpop.f32.mrf.mxu0
  %222 = vdwg.mxu0
  %223 = vmatprep.subr.mxu0 0.0
  %224 = vmatpush1.msra.mxu0 0.0
  %225 = vmatprep.subr.mxu0 0.0
  %226 = vmatpush1.msra.mxu0 0.0
  %227 = vmatprep.subr.mxu0 0.0
  %228 = vmatpush1.msra.mxu0 0.0
  %229 = vmatprep.subr.mxu0 0.0
  %230 = vmatpush1.msra.mxu0 0.0
  %231 = vmatprep.subr.mxu0 0.0
  %232 = vmatpush1.msra.mxu0 0.0
  %233 = vmatprep.subr.mxu0 0.0
  %234 = vmatpush1.msra.mxu0 0.0
  %235 = vmatprep.subr.mxu0 0.0
  %236 = vmatpush1.msra.mxu0 0.0
  %237 = vmatprep.subr.mxu0 0.0
  %238 = vmatpush1.msra.mxu0 0.0
  %239 = vmatprep.subr.mxu0 0.0
  %240 = vmatpush1.msra.mxu0 0.0
  %241 = vmatprep.subr.mxu0 0.0
  %242 = vmatpush1.msra.mxu0 0.0
  %243 = vmatprep.subr.mxu0 0.0
  %244 = vmatpush1.msra.mxu0 0.0
  %245 = vmatprep.subr.mxu0 0.0
  %246 = vmatpush1.msra.mxu0 0.0
  %247 = vmatprep.subr.mxu0 0.0
  %v248 = vand.u32 %v48, 4294901760
  %v249 = vsub.f32 %v48, %v248
  %250 = vmatpush1.msra.mxu0 %v249
  %251 = vmatprep.subr.mxu0 0.0
  %v252 = vand.u32 %v47, 4294901760
  %v253 = vsub.f32 %v47, %v252
  %254 = vmatpush1.msra.mxu0 %v253
  %255 = vmatprep.subr.mxu0 0.0
  %v256 = vand.u32 %v46, 4294901760
  %v257 = vsub.f32 %v46, %v256
  %258 = vmatpush1.msra.mxu0 %v257
  %259 = vmatprep.subr.mxu0 0.0
  %v260 = vand.u32 %v45, 4294901760
  %v261 = vsub.f32 %v45, %v260
  %262 = vmatpush1.msra.mxu0 %v261
  %263 = vmatprep.subr.mxu0 0.0
  %264 = vmatpush2.msra.mxu0 0.0
  %265 = vmatprep.subr.mxu0 0.0
  %266 = vmatpush2.msra.mxu0 0.0
  %267 = vmatprep.subr.mxu0 0.0
  %268 = vmatpush2.msra.mxu0 0.0
  %269 = vmatprep.subr.mxu0 0.0
  %270 = vmatpush2.msra.mxu0 0.0
  %271 = vmatprep.subr.mxu0 0.0
  %272 = vmatpush2.msra.mxu0 0.0
  %273 = vmatprep.subr.mxu0 0.0
  %274 = vmatpush2.msra.mxu0 0.0
  %275 = vmatprep.subr.mxu0 0.0
  %276 = vmatpush2.msra.mxu0 0.0
  %277 = vmatprep.subr.mxu0 0.0
  %278 = vmatpush2.msra.mxu0 0.0
  %279 = vmatprep.subr.mxu0 0.0
  %280 = vmatpush2.msra.mxu0 0.0
  %281 = vmatprep.subr.mxu0 0.0
  %282 = vmatpush2.msra.mxu0 0.0
  %283 = vmatprep.subr.mxu0 0.0
  %284 = vmatpush2.msra.mxu0 0.0
  %285 = vmatprep.subr.mxu0 0.0
  %286 = vmatpush2.msra.mxu0 0.0
  %287 = vmatprep.subr.mxu0 0.0
  %288 = vmatpush2.msra.mxu0 0.0
  %289 = vmatprep.subr.mxu0 0.0
  %290 = vmatpush2.msra.mxu0 0.0
  %291 = vmatprep.subr.mxu0 0.0
  %292 = vmatpush2.msra.mxu0 0.0
  %293 = vmatprep.subr.mxu0 0.0
  %294 = vmatpush2.msra.mxu0 0.0
  %295 = vmatprep.mubr.f32.mxu0 0.0
  %v296 = vand.u32 %v51, 4294901760
  %v297 = vsub.f32 %v51, %v296
  %298 = vmatmul.mubr.f32.gmra.mxu0 %v297
  %v299 = vpop.f32.mrf.mxu0
  %v300 = vadd.f32 %v220, %v299
  %v301 = vpop.f32.mrf.mxu0
  %302 = vdwg.mxu0
  %303 = vmatprep.subr.mxu0 0.0
  %304 = vmatpush1.msra.mxu0 0.0
  %305 = vmatprep.subr.mxu0 0.0
  %306 = vmatpush1.msra.mxu0 0.0
  %307 = vmatprep.subr.mxu0 0.0
  %308 = vmatpush1.msra.mxu0 0.0
  %309 = vmatprep.subr.mxu0 0.0
  %310 = vmatpush1.msra.mxu0 0.0
  %311 = vmatprep.subr.mxu0 0.0
  %312 = vmatpush1.msra.mxu0 0.0
  %313 = vmatprep.subr.mxu0 0.0
  %314 = vmatpush1.msra.mxu0 0.0
  %315 = vmatprep.subr.mxu0 0.0
  %316 = vmatpush1.msra.mxu0 0.0
  %317 = vmatprep.subr.mxu0 0.0
  %318 = vmatpush1.msra.mxu0 0.0
  %319 = vmatprep.subr.mxu0 0.0
  %320 = vmatpush1.msra.mxu0 0.0
  %321 = vmatprep.subr.mxu0 0.0
  %322 = vmatpush1.msra.mxu0 0.0
  %323 = vmatprep.subr.mxu0 0.0
  %324 = vmatpush1.msra.mxu0 0.0
  %325 = vmatprep.subr.mxu0 0.0
  %326 = vmatpush1.msra.mxu0 0.0
  %327 = vmatprep.subr.mxu0 0.0
  %v328 = vand.u32 %v48, 4294901760
  %329 = vmatpush1.msra.mxu0 %v328
  %330 = vmatprep.subr.mxu0 0.0
  %v331 = vand.u32 %v47, 4294901760
  %332 = vmatpush1.msra.mxu0 %v331
  %333 = vmatprep.subr.mxu0 0.0
  %v334 = vand.u32 %v46, 4294901760
  %335 = vmatpush1.msra.mxu0 %v334
  %336 = vmatprep.subr.mxu0 0.0
  %v337 = vand.u32 %v45, 4294901760
  %338 = vmatpush1.msra.mxu0 %v337
  %339 = vmatprep.subr.mxu0 0.0
  %340 = vmatpush2.msra.mxu0 0.0
  %341 = vmatprep.subr.mxu0 0.0
  %342 = vmatpush2.msra.mxu0 0.0
  %343 = vmatprep.subr.mxu0 0.0
  %344 = vmatpush2.msra.mxu0 0.0
  %345 = vmatprep.subr.mxu0 0.0
  %346 = vmatpush2.msra.mxu0 0.0
  %347 = vmatprep.subr.mxu0 0.0
  %348 = vmatpush2.msra.mxu0 0.0
  %349 = vmatprep.subr.mxu0 0.0
  %350 = vmatpush2.msra.mxu0 0.0
  %351 = vmatprep.subr.mxu0 0.0
  %352 = vmatpush2.msra.mxu0 0.0
  %353 = vmatprep.subr.mxu0 0.0
  %354 = vmatpush2.msra.mxu0 0.0
  %355 = vmatprep.subr.mxu0 0.0
  %356 = vmatpush2.msra.mxu0 0.0
  %357 = vmatprep.subr.mxu0 0.0
  %358 = vmatpush2.msra.mxu0 0.0
  %359 = vmatprep.subr.mxu0 0.0
  %360 = vmatpush2.msra.mxu0 0.0
  %361 = vmatprep.subr.mxu0 0.0
  %362 = vmatpush2.msra.mxu0 0.0
  %363 = vmatprep.subr.mxu0 0.0
  %364 = vmatpush2.msra.mxu0 0.0
  %365 = vmatprep.subr.mxu0 0.0
  %366 = vmatpush2.msra.mxu0 0.0
  %367 = vmatprep.subr.mxu0 0.0
  %368 = vmatpush2.msra.mxu0 0.0
  %369 = vmatprep.subr.mxu0 0.0
  %370 = vmatpush2.msra.mxu0 0.0
  %371 = vmatprep.mubr.f32.mxu0 0.0
  %v372 = vand.u32 %v51, 4294901760
  %v373 = vsub.f32 %v51, %v372
  %v374 = vand.u32 %v373, 4294901760
  %375 = vmatmul.mubr.f32.gmra.mxu0 %v374
  %v376 = vpop.f32.mrf.mxu0
  %v377 = vadd.f32 %v300, %v376
  %v378 = vpop.f32.mrf.mxu0
  %379 = vdwg.mxu0
  %380 = vmatprep.subr.mxu0 0.0
  %381 = vmatpush1.msra.mxu0 0.0
  %382 = vmatprep.subr.mxu0 0.0
  %383 = vmatpush1.msra.mxu0 0.0
  %384 = vmatprep.subr.mxu0 0.0
  %385 = vmatpush1.msra.mxu0 0.0
  %386 = vmatprep.subr.mxu0 0.0
  %387 = vmatpush1.msra.mxu0 0.0
  %388 = vmatprep.subr.mxu0 0.0
  %389 = vmatpush1.msra.mxu0 0.0
  %390 = vmatprep.subr.mxu0 0.0
  %391 = vmatpush1.msra.mxu0 0.0
  %392 = vmatprep.subr.mxu0 0.0
  %393 = vmatpush1.msra.mxu0 0.0
  %394 = vmatprep.subr.mxu0 0.0
  %395 = vmatpush1.msra.mxu0 0.0
  %396 = vmatprep.subr.mxu0 0.0
  %397 = vmatpush1.msra.mxu0 0.0
  %398 = vmatprep.subr.mxu0 0.0
  %399 = vmatpush1.msra.mxu0 0.0
  %400 = vmatprep.subr.mxu0 0.0
  %401 = vmatpush1.msra.mxu0 0.0
  %402 = vmatprep.subr.mxu0 0.0
  %403 = vmatpush1.msra.mxu0 0.0
  %404 = vmatprep.subr.mxu0 0.0
  %v405 = vand.u32 %v48, 4294901760
  %v406 = vsub.f32 %v48, %v405
  %v407 = vand.u32 %v406, 4294901760
  %408 = vmatpush1.msra.mxu0 %v407
  %409 = vmatprep.subr.mxu0 0.0
  %v410 = vand.u32 %v47, 4294901760
  %v411 = vsub.f32 %v47, %v410
  %v412 = vand.u32 %v411, 4294901760
  %413 = vmatpush1.msra.mxu0 %v412
  %414 = vmatprep.subr.mxu0 0.0
  %v415 = vand.u32 %v46, 4294901760
  %v416 = vsub.f32 %v46, %v415
  %v417 = vand.u32 %v416, 4294901760
  %418 = vmatpush1.msra.mxu0 %v417
  %419 = vmatprep.subr.mxu0 0.0
  %v420 = vand.u32 %v45, 4294901760
  %v421 = vsub.f32 %v45, %v420
  %v422 = vand.u32 %v421, 4294901760
  %423 = vmatpush1.msra.mxu0 %v422
  %424 = vmatprep.subr.mxu0 0.0
  %425 = vmatpush2.msra.mxu0 0.0
  %426 = vmatprep.subr.mxu0 0.0
  %427 = vmatpush2.msra.mxu0 0.0
  %428 = vmatprep.subr.mxu0 0.0
  %429 = vmatpush2.msra.mxu0 0.0
  %430 = vmatprep.subr.mxu0 0.0
  %431 = vmatpush2.msra.mxu0 0.0
  %432 = vmatprep.subr.mxu0 0.0
  %433 = vmatpush2.msra.mxu0 0.0
  %434 = vmatprep.subr.mxu0 0.0
  %435 = vmatpush2.msra.mxu0 0.0
  %436 = vmatprep.subr.mxu0 0.0
  %437 = vmatpush2.msra.mxu0 0.0
  %438 = vmatprep.subr.mxu0 0.0
  %439 = vmatpush2.msra.mxu0 0.0
  %440 = vmatprep.subr.mxu0 0.0
  %441 = vmatpush2.msra.mxu0 0.0
  %442 = vmatprep.subr.mxu0 0.0
  %443 = vmatpush2.msra.mxu0 0.0
  %444 = vmatprep.subr.mxu0 0.0
  %445 = vmatpush2.msra.mxu0 0.0
  %446 = vmatprep.subr.mxu0 0.0
  %447 = vmatpush2.msra.mxu0 0.0
  %448 = vmatprep.subr.mxu0 0.0
  %449 = vmatpush2.msra.mxu0 0.0
  %450 = vmatprep.subr.mxu0 0.0
  %451 = vmatpush2.msra.mxu0 0.0
  %452 = vmatprep.subr.mxu0 0.0
  %453 = vmatpush2.msra.mxu0 0.0
  %454 = vmatprep.subr.mxu0 0.0
  %455 = vmatpush2.msra.mxu0 0.0
  %456 = vmatprep.mubr.f32.mxu0 0.0
  %v457 = vand.u32 %v51, 4294901760
  %458 = vmatmul.mubr.f32.gmra.mxu0 %v457
  %v459 = vpop.f32.mrf.mxu0
  %v460 = vadd.f32 %v377, %v459
  %v461 = vpop.f32.mrf.mxu0
  %462 = vdwg.mxu0
  %463 = vmatprep.subr.mxu0 0.0
  %464 = vmatpush1.msra.mxu0 0.0
  %465 = vmatprep.subr.mxu0 0.0
  %466 = vmatpush1.msra.mxu0 0.0
  %467 = vmatprep.subr.mxu0 0.0
  %468 = vmatpush1.msra.mxu0 0.0
  %469 = vmatprep.subr.mxu0 0.0
  %470 = vmatpush1.msra.mxu0 0.0
  %471 = vmatprep.subr.mxu0 0.0
  %472 = vmatpush1.msra.mxu0 0.0
  %473 = vmatprep.subr.mxu0 0.0
  %474 = vmatpush1.msra.mxu0 0.0
  %475 = vmatprep.subr.mxu0 0.0
  %476 = vmatpush1.msra.mxu0 0.0
  %477 = vmatprep.subr.mxu0 0.0
  %478 = vmatpush1.msra.mxu0 0.0
  %479 = vmatprep.subr.mxu0 0.0
  %480 = vmatpush1.msra.mxu0 0.0
  %481 = vmatprep.subr.mxu0 0.0
  %482 = vmatpush1.msra.mxu0 0.0
  %483 = vmatprep.subr.mxu0 0.0
  %484 = vmatpush1.msra.mxu0 0.0
  %485 = vmatprep.subr.mxu0 0.0
  %486 = vmatpush1.msra.mxu0 0.0
  %487 = vmatprep.subr.mxu0 0.0
  %v488 = vand.u32 %v48, 4294901760
  %489 = vmatpush1.msra.mxu0 %v488
  %490 = vmatprep.subr.mxu0 0.0
  %v491 = vand.u32 %v47, 4294901760
  %492 = vmatpush1.msra.mxu0 %v491
  %493 = vmatprep.subr.mxu0 0.0
  %v494 = vand.u32 %v46, 4294901760
  %495 = vmatpush1.msra.mxu0 %v494
  %496 = vmatprep.subr.mxu0 0.0
  %v497 = vand.u32 %v45, 4294901760
  %498 = vmatpush1.msra.mxu0 %v497
  %499 = vmatprep.subr.mxu0 0.0
  %500 = vmatpush2.msra.mxu0 0.0
  %501 = vmatprep.subr.mxu0 0.0
  %502 = vmatpush2.msra.mxu0 0.0
  %503 = vmatprep.subr.mxu0 0.0
  %504 = vmatpush2.msra.mxu0 0.0
  %505 = vmatprep.subr.mxu0 0.0
  %506 = vmatpush2.msra.mxu0 0.0
  %507 = vmatprep.subr.mxu0 0.0
  %508 = vmatpush2.msra.mxu0 0.0
  %509 = vmatprep.subr.mxu0 0.0
  %510 = vmatpush2.msra.mxu0 0.0
  %511 = vmatprep.subr.mxu0 0.0
  %512 = vmatpush2.msra.mxu0 0.0
  %513 = vmatprep.subr.mxu0 0.0
  %514 = vmatpush2.msra.mxu0 0.0
  %515 = vmatprep.subr.mxu0 0.0
  %516 = vmatpush2.msra.mxu0 0.0
  %517 = vmatprep.subr.mxu0 0.0
  %518 = vmatpush2.msra.mxu0 0.0
  %519 = vmatprep.subr.mxu0 0.0
  %520 = vmatpush2.msra.mxu0 0.0
  %521 = vmatprep.subr.mxu0 0.0
  %522 = vmatpush2.msra.mxu0 0.0
  %523 = vmatprep.subr.mxu0 0.0
  %524 = vmatpush2.msra.mxu0 0.0
  %525 = vmatprep.subr.mxu0 0.0
  %526 = vmatpush2.msra.mxu0 0.0
  %527 = vmatprep.subr.mxu0 0.0
  %528 = vmatpush2.msra.mxu0 0.0
  %529 = vmatprep.subr.mxu0 0.0
  %530 = vmatpush2.msra.mxu0 0.0
  %531 = vmatprep.mubr.f32.mxu0 0.0
  %v532 = vand.u32 %v51, 4294901760
  %533 = vmatmul.mubr.f32.gmra.mxu0 %v532
  %v534 = vpop.f32.mrf.mxu0
  %v535 = vadd.f32 %v460, %v534
  %v536 = vpop.f32.mrf.mxu0
  %537 = vdwg.mxu0
  %v538 = vadd.f32 %v20, %v535
  %v539 = vld [vmem:[%s3] sm:$0xff]
  %v540 = vld [vmem:[%s1] sm:$0xff]
  %vm541 = vcmask 64512
  %v543 = vsel %vm541, %v539, 0
  %545 = vmatprep.subr.mxu0 0.0
  %546 = vmatpush1.msra.mxu0 0.0
  %547 = vmatprep.subr.mxu0 0.0
  %548 = vmatpush1.msra.mxu0 0.0
  %549 = vmatprep.subr.mxu0 0.0
  %550 = vmatpush1.msra.mxu0 0.0
  %551 = vmatprep.subr.mxu0 0.0
  %552 = vmatpush1.msra.mxu0 0.0
  %553 = vmatprep.subr.mxu0 0.0
  %554 = vmatpush1.msra.mxu0 0.0
  %555 = vmatprep.subr.mxu0 0.0
  %556 = vmatpush1.msra.mxu0 0.0
  %557 = vmatprep.subr.mxu0 0.0
  %558 = vmatpush1.msra.mxu0 0.0
  %559 = vmatprep.subr.mxu0 0.0
  %560 = vmatpush1.msra.mxu0 0.0
  %561 = vmatprep.subr.mxu0 0.0
  %562 = vmatpush1.msra.mxu0 0.0
  %563 = vmatprep.subr.mxu0 0.0
  %564 = vmatpush1.msra.mxu0 0.0
  %565 = vmatprep.subr.mxu0 0.0
  %566 = vmatpush1.msra.mxu0 0.0
  %567 = vmatprep.subr.mxu0 0.0
  %568 = vmatpush1.msra.mxu0 0.0
  %569 = vmatprep.subr.mxu0 0.0
  %570 = vmatpush1.msra.mxu0 0.0
  %571 = vmatprep.subr.mxu0 0.0
  %572 = vmatpush1.msra.mxu0 0.0
  %573 = vmatprep.subr.mxu0 0.0
  %574 = vmatpush1.msra.mxu0 0.0
  %575 = vmatprep.subr.mxu0 0.0
  %v576 = vand.u32 %v540, 4294901760
  %577 = vmatpush1.msra.mxu0 %v576
  %578 = vmatprep.subr.mxu0 0.0
  %579 = vmatpush2.msra.mxu0 0.0
  %580 = vmatprep.subr.mxu0 0.0
  %581 = vmatpush2.msra.mxu0 0.0
  %582 = vmatprep.subr.mxu0 0.0
  %583 = vmatpush2.msra.mxu0 0.0
  %584 = vmatprep.subr.mxu0 0.0
  %585 = vmatpush2.msra.mxu0 0.0
  %586 = vmatprep.subr.mxu0 0.0
  %587 = vmatpush2.msra.mxu0 0.0
  %588 = vmatprep.subr.mxu0 0.0
  %589 = vmatpush2.msra.mxu0 0.0
  %590 = vmatprep.subr.mxu0 0.0
  %591 = vmatpush2.msra.mxu0 0.0
  %592 = vmatprep.subr.mxu0 0.0
  %593 = vmatpush2.msra.mxu0 0.0
  %594 = vmatprep.subr.mxu0 0.0
  %595 = vmatpush2.msra.mxu0 0.0
  %596 = vmatprep.subr.mxu0 0.0
  %597 = vmatpush2.msra.mxu0 0.0
  %598 = vmatprep.subr.mxu0 0.0
  %599 = vmatpush2.msra.mxu0 0.0
  %600 = vmatprep.subr.mxu0 0.0
  %601 = vmatpush2.msra.mxu0 0.0
  %602 = vmatprep.subr.mxu0 0.0
  %603 = vmatpush2.msra.mxu0 0.0
  %604 = vmatprep.subr.mxu0 0.0
  %605 = vmatpush2.msra.mxu0 0.0
  %606 = vmatprep.subr.mxu0 0.0
  %607 = vmatpush2.msra.mxu0 0.0
  %608 = vmatprep.subr.mxu0 0.0
  %609 = vmatpush2.msra.mxu0 0.0
  %610 = vmatprep.mubr.f32.mxu0 0.0
  %v611 = vand.u32 %v543, 4294901760
  %v612 = vsub.f32 %v543, %v611
  %v613 = vand.u32 %v612, 4294901760
  %v614 = vsub.f32 %v612, %v613
  %v615 = vand.u32 %v614, 4294901760
  %616 = vmatmul.mubr.f32.gmra.mxu0 %v615
  %v617 = vpop.f32.mrf.mxu0
  %v618 = vadd.f32 0.0, %v617
  %v619 = vpop.f32.mrf.mxu0
  %620 = vdwg.mxu0
  %621 = vmatprep.subr.mxu0 0.0
  %622 = vmatpush1.msra.mxu0 0.0
  %623 = vmatprep.subr.mxu0 0.0
  %624 = vmatpush1.msra.mxu0 0.0
  %625 = vmatprep.subr.mxu0 0.0
  %626 = vmatpush1.msra.mxu0 0.0
  %627 = vmatprep.subr.mxu0 0.0
  %628 = vmatpush1.msra.mxu0 0.0
  %629 = vmatprep.subr.mxu0 0.0
  %630 = vmatpush1.msra.mxu0 0.0
  %631 = vmatprep.subr.mxu0 0.0
  %632 = vmatpush1.msra.mxu0 0.0
  %633 = vmatprep.subr.mxu0 0.0
  %634 = vmatpush1.msra.mxu0 0.0
  %635 = vmatprep.subr.mxu0 0.0
  %636 = vmatpush1.msra.mxu0 0.0
  %637 = vmatprep.subr.mxu0 0.0
  %638 = vmatpush1.msra.mxu0 0.0
  %639 = vmatprep.subr.mxu0 0.0
  %640 = vmatpush1.msra.mxu0 0.0
  %641 = vmatprep.subr.mxu0 0.0
  %642 = vmatpush1.msra.mxu0 0.0
  %643 = vmatprep.subr.mxu0 0.0
  %644 = vmatpush1.msra.mxu0 0.0
  %645 = vmatprep.subr.mxu0 0.0
  %646 = vmatpush1.msra.mxu0 0.0
  %647 = vmatprep.subr.mxu0 0.0
  %648 = vmatpush1.msra.mxu0 0.0
  %649 = vmatprep.subr.mxu0 0.0
  %650 = vmatpush1.msra.mxu0 0.0
  %651 = vmatprep.subr.mxu0 0.0
  %v652 = vand.u32 %v540, 4294901760
  %v653 = vsub.f32 %v540, %v652
  %v654 = vand.u32 %v653, 4294901760
  %v655 = vsub.f32 %v653, %v654
  %v656 = vand.u32 %v655, 4294901760
  %657 = vmatpush1.msra.mxu0 %v656
  %658 = vmatprep.subr.mxu0 0.0
  %659 = vmatpush2.msra.mxu0 0.0
  %660 = vmatprep.subr.mxu0 0.0
  %661 = vmatpush2.msra.mxu0 0.0
  %662 = vmatprep.subr.mxu0 0.0
  %663 = vmatpush2.msra.mxu0 0.0
  %664 = vmatprep.subr.mxu0 0.0
  %665 = vmatpush2.msra.mxu0 0.0
  %666 = vmatprep.subr.mxu0 0.0
  %667 = vmatpush2.msra.mxu0 0.0
  %668 = vmatprep.subr.mxu0 0.0
  %669 = vmatpush2.msra.mxu0 0.0
  %670 = vmatprep.subr.mxu0 0.0
  %671 = vmatpush2.msra.mxu0 0.0
  %672 = vmatprep.subr.mxu0 0.0
  %673 = vmatpush2.msra.mxu0 0.0
  %674 = vmatprep.subr.mxu0 0.0
  %675 = vmatpush2.msra.mxu0 0.0
  %676 = vmatprep.subr.mxu0 0.0
  %677 = vmatpush2.msra.mxu0 0.0
  %678 = vmatprep.subr.mxu0 0.0
  %679 = vmatpush2.msra.mxu0 0.0
  %680 = vmatprep.subr.mxu0 0.0
  %681 = vmatpush2.msra.mxu0 0.0
  %682 = vmatprep.subr.mxu0 0.0
  %683 = vmatpush2.msra.mxu0 0.0
  %684 = vmatprep.subr.mxu0 0.0
  %685 = vmatpush2.msra.mxu0 0.0
  %686 = vmatprep.subr.mxu0 0.0
  %687 = vmatpush2.msra.mxu0 0.0
  %688 = vmatprep.subr.mxu0 0.0
  %689 = vmatpush2.msra.mxu0 0.0
  %690 = vmatprep.mubr.f32.mxu0 0.0
  %v691 = vand.u32 %v543, 4294901760
  %692 = vmatmul.mubr.f32.gmra.mxu0 %v691
  %v693 = vpop.f32.mrf.mxu0
  %v694 = vadd.f32 %v618, %v693
  %v695 = vpop.f32.mrf.mxu0
  %696 = vdwg.mxu0
  %697 = vmatprep.subr.mxu0 0.0
  %698 = vmatpush1.msra.mxu0 0.0
  %699 = vmatprep.subr.mxu0 0.0
  %700 = vmatpush1.msra.mxu0 0.0
  %701 = vmatprep.subr.mxu0 0.0
  %702 = vmatpush1.msra.mxu0 0.0
  %703 = vmatprep.subr.mxu0 0.0
  %704 = vmatpush1.msra.mxu0 0.0
  %705 = vmatprep.subr.mxu0 0.0
  %706 = vmatpush1.msra.mxu0 0.0
  %707 = vmatprep.subr.mxu0 0.0
  %708 = vmatpush1.msra.mxu0 0.0
  %709 = vmatprep.subr.mxu0 0.0
  %710 = vmatpush1.msra.mxu0 0.0
  %711 = vmatprep.subr.mxu0 0.0
  %712 = vmatpush1.msra.mxu0 0.0
  %713 = vmatprep.subr.mxu0 0.0
  %714 = vmatpush1.msra.mxu0 0.0
  %715 = vmatprep.subr.mxu0 0.0
  %716 = vmatpush1.msra.mxu0 0.0
  %717 = vmatprep.subr.mxu0 0.0
  %718 = vmatpush1.msra.mxu0 0.0
  %719 = vmatprep.subr.mxu0 0.0
  %720 = vmatpush1.msra.mxu0 0.0
  %721 = vmatprep.subr.mxu0 0.0
  %722 = vmatpush1.msra.mxu0 0.0
  %723 = vmatprep.subr.mxu0 0.0
  %724 = vmatpush1.msra.mxu0 0.0
  %725 = vmatprep.subr.mxu0 0.0
  %726 = vmatpush1.msra.mxu0 0.0
  %727 = vmatprep.subr.mxu0 0.0
  %v728 = vand.u32 %v540, 4294901760
  %v729 = vsub.f32 %v540, %v728
  %730 = vmatpush1.msra.mxu0 %v729
  %731 = vmatprep.subr.mxu0 0.0
  %732 = vmatpush2.msra.mxu0 0.0
  %733 = vmatprep.subr.mxu0 0.0
  %734 = vmatpush2.msra.mxu0 0.0
  %735 = vmatprep.subr.mxu0 0.0
  %736 = vmatpush2.msra.mxu0 0.0
  %737 = vmatprep.subr.mxu0 0.0
  %738 = vmatpush2.msra.mxu0 0.0
  %739 = vmatprep.subr.mxu0 0.0
  %740 = vmatpush2.msra.mxu0 0.0
  %741 = vmatprep.subr.mxu0 0.0
  %742 = vmatpush2.msra.mxu0 0.0
  %743 = vmatprep.subr.mxu0 0.0
  %744 = vmatpush2.msra.mxu0 0.0
  %745 = vmatprep.subr.mxu0 0.0
  %746 = vmatpush2.msra.mxu0 0.0
  %747 = vmatprep.subr.mxu0 0.0
  %748 = vmatpush2.msra.mxu0 0.0
  %749 = vmatprep.subr.mxu0 0.0
  %750 = vmatpush2.msra.mxu0 0.0
  %751 = vmatprep.subr.mxu0 0.0
  %752 = vmatpush2.msra.mxu0 0.0
  %753 = vmatprep.subr.mxu0 0.0
  %754 = vmatpush2.msra.mxu0 0.0
  %755 = vmatprep.subr.mxu0 0.0
  %756 = vmatpush2.msra.mxu0 0.0
  %757 = vmatprep.subr.mxu0 0.0
  %758 = vmatpush2.msra.mxu0 0.0
  %759 = vmatprep.subr.mxu0 0.0
  %760 = vmatpush2.msra.mxu0 0.0
  %761 = vmatprep.subr.mxu0 0.0
  %762 = vmatpush2.msra.mxu0 0.0
  %763 = vmatprep.mubr.f32.mxu0 0.0
  %v764 = vand.u32 %v543, 4294901760
  %v765 = vsub.f32 %v543, %v764
  %766 = vmatmul.mubr.f32.gmra.mxu0 %v765
  %v767 = vpop.f32.mrf.mxu0
  %v768 = vadd.f32 %v694, %v767
  %v769 = vpop.f32.mrf.mxu0
  %770 = vdwg.mxu0
  %771 = vmatprep.subr.mxu0 0.0
  %772 = vmatpush1.msra.mxu0 0.0
  %773 = vmatprep.subr.mxu0 0.0
  %774 = vmatpush1.msra.mxu0 0.0
  %775 = vmatprep.subr.mxu0 0.0
  %776 = vmatpush1.msra.mxu0 0.0
  %777 = vmatprep.subr.mxu0 0.0
  %778 = vmatpush1.msra.mxu0 0.0
  %779 = vmatprep.subr.mxu0 0.0
  %780 = vmatpush1.msra.mxu0 0.0
  %781 = vmatprep.subr.mxu0 0.0
  %782 = vmatpush1.msra.mxu0 0.0
  %783 = vmatprep.subr.mxu0 0.0
  %784 = vmatpush1.msra.mxu0 0.0
  %785 = vmatprep.subr.mxu0 0.0
  %786 = vmatpush1.msra.mxu0 0.0
  %787 = vmatprep.subr.mxu0 0.0
  %788 = vmatpush1.msra.mxu0 0.0
  %789 = vmatprep.subr.mxu0 0.0
  %790 = vmatpush1.msra.mxu0 0.0
  %791 = vmatprep.subr.mxu0 0.0
  %792 = vmatpush1.msra.mxu0 0.0
  %793 = vmatprep.subr.mxu0 0.0
  %794 = vmatpush1.msra.mxu0 0.0
  %795 = vmatprep.subr.mxu0 0.0
  %796 = vmatpush1.msra.mxu0 0.0
  %797 = vmatprep.subr.mxu0 0.0
  %798 = vmatpush1.msra.mxu0 0.0
  %799 = vmatprep.subr.mxu0 0.0
  %800 = vmatpush1.msra.mxu0 0.0
  %801 = vmatprep.subr.mxu0 0.0
  %v802 = vand.u32 %v540, 4294901760
  %803 = vmatpush1.msra.mxu0 %v802
  %804 = vmatprep.subr.mxu0 0.0
  %805 = vmatpush2.msra.mxu0 0.0
  %806 = vmatprep.subr.mxu0 0.0
  %807 = vmatpush2.msra.mxu0 0.0
  %808 = vmatprep.subr.mxu0 0.0
  %809 = vmatpush2.msra.mxu0 0.0
  %810 = vmatprep.subr.mxu0 0.0
  %811 = vmatpush2.msra.mxu0 0.0
  %812 = vmatprep.subr.mxu0 0.0
  %813 = vmatpush2.msra.mxu0 0.0
  %814 = vmatprep.subr.mxu0 0.0
  %815 = vmatpush2.msra.mxu0 0.0
  %816 = vmatprep.subr.mxu0 0.0
  %817 = vmatpush2.msra.mxu0 0.0
  %818 = vmatprep.subr.mxu0 0.0
  %819 = vmatpush2.msra.mxu0 0.0
  %820 = vmatprep.subr.mxu0 0.0
  %821 = vmatpush2.msra.mxu0 0.0
  %822 = vmatprep.subr.mxu0 0.0
  %823 = vmatpush2.msra.mxu0 0.0
  %824 = vmatprep.subr.mxu0 0.0
  %825 = vmatpush2.msra.mxu0 0.0
  %826 = vmatprep.subr.mxu0 0.0
  %827 = vmatpush2.msra.mxu0 0.0
  %828 = vmatprep.subr.mxu0 0.0
  %829 = vmatpush2.msra.mxu0 0.0
  %830 = vmatprep.subr.mxu0 0.0
  %831 = vmatpush2.msra.mxu0 0.0
  %832 = vmatprep.subr.mxu0 0.0
  %833 = vmatpush2.msra.mxu0 0.0
  %834 = vmatprep.subr.mxu0 0.0
  %835 = vmatpush2.msra.mxu0 0.0
  %836 = vmatprep.mubr.f32.mxu0 0.0
  %v837 = vand.u32 %v543, 4294901760
  %v838 = vsub.f32 %v543, %v837
  %v839 = vand.u32 %v838, 4294901760
  %840 = vmatmul.mubr.f32.gmra.mxu0 %v839
  %v841 = vpop.f32.mrf.mxu0
  %v842 = vadd.f32 %v768, %v841
  %v843 = vpop.f32.mrf.mxu0
  %844 = vdwg.mxu0
  %845 = vmatprep.subr.mxu0 0.0
  %846 = vmatpush1.msra.mxu0 0.0
  %847 = vmatprep.subr.mxu0 0.0
  %848 = vmatpush1.msra.mxu0 0.0
  %849 = vmatprep.subr.mxu0 0.0
  %850 = vmatpush1.msra.mxu0 0.0
  %851 = vmatprep.subr.mxu0 0.0
  %852 = vmatpush1.msra.mxu0 0.0
  %853 = vmatprep.subr.mxu0 0.0
  %854 = vmatpush1.msra.mxu0 0.0
  %855 = vmatprep.subr.mxu0 0.0
  %856 = vmatpush1.msra.mxu0 0.0
  %857 = vmatprep.subr.mxu0 0.0
  %858 = vmatpush1.msra.mxu0 0.0
  %859 = vmatprep.subr.mxu0 0.0
  %860 = vmatpush1.msra.mxu0 0.0
  %861 = vmatprep.subr.mxu0 0.0
  %862 = vmatpush1.msra.mxu0 0.0
  %863 = vmatprep.subr.mxu0 0.0
  %864 = vmatpush1.msra.mxu0 0.0
  %865 = vmatprep.subr.mxu0 0.0
  %866 = vmatpush1.msra.mxu0 0.0
  %867 = vmatprep.subr.mxu0 0.0
  %868 = vmatpush1.msra.mxu0 0.0
  %869 = vmatprep.subr.mxu0 0.0
  %870 = vmatpush1.msra.mxu0 0.0
  %871 = vmatprep.subr.mxu0 0.0
  %872 = vmatpush1.msra.mxu0 0.0
  %873 = vmatprep.subr.mxu0 0.0
  %874 = vmatpush1.msra.mxu0 0.0
  %875 = vmatprep.subr.mxu0 0.0
  %v876 = vand.u32 %v540, 4294901760
  %v877 = vsub.f32 %v540, %v876
  %v878 = vand.u32 %v877, 4294901760
  %879 = vmatpush1.msra.mxu0 %v878
  %880 = vmatprep.subr.mxu0 0.0
  %881 = vmatpush2.msra.mxu0 0.0
  %882 = vmatprep.subr.mxu0 0.0
  %883 = vmatpush2.msra.mxu0 0.0
  %884 = vmatprep.subr.mxu0 0.0
  %885 = vmatpush2.msra.mxu0 0.0
  %886 = vmatprep.subr.mxu0 0.0
  %887 = vmatpush2.msra.mxu0 0.0
  %888 = vmatprep.subr.mxu0 0.0
  %889 = vmatpush2.msra.mxu0 0.0
  %890 = vmatprep.subr.mxu0 0.0
  %891 = vmatpush2.msra.mxu0 0.0
  %892 = vmatprep.subr.mxu0 0.0
  %893 = vmatpush2.msra.mxu0 0.0
  %894 = vmatprep.subr.mxu0 0.0
  %895 = vmatpush2.msra.mxu0 0.0
  %896 = vmatprep.subr.mxu0 0.0
  %897 = vmatpush2.msra.mxu0 0.0
  %898 = vmatprep.subr.mxu0 0.0
  %899 = vmatpush2.msra.mxu0 0.0
  %900 = vmatprep.subr.mxu0 0.0
  %901 = vmatpush2.msra.mxu0 0.0
  %902 = vmatprep.subr.mxu0 0.0
  %903 = vmatpush2.msra.mxu0 0.0
  %904 = vmatprep.subr.mxu0 0.0
  %905 = vmatpush2.msra.mxu0 0.0
  %906 = vmatprep.subr.mxu0 0.0
  %907 = vmatpush2.msra.mxu0 0.0
  %908 = vmatprep.subr.mxu0 0.0
  %909 = vmatpush2.msra.mxu0 0.0
  %910 = vmatprep.subr.mxu0 0.0
  %911 = vmatpush2.msra.mxu0 0.0
  %912 = vmatprep.mubr.f32.mxu0 0.0
  %v913 = vand.u32 %v543, 4294901760
  %914 = vmatmul.mubr.f32.gmra.mxu0 %v913
  %v915 = vpop.f32.mrf.mxu0
  %v916 = vadd.f32 %v842, %v915
  %v917 = vpop.f32.mrf.mxu0
  %918 = vdwg.mxu0
  %919 = vmatprep.subr.mxu0 0.0
  %920 = vmatpush1.msra.mxu0 0.0
  %921 = vmatprep.subr.mxu0 0.0
  %922 = vmatpush1.msra.mxu0 0.0
  %923 = vmatprep.subr.mxu0 0.0
  %924 = vmatpush1.msra.mxu0 0.0
  %925 = vmatprep.subr.mxu0 0.0
  %926 = vmatpush1.msra.mxu0 0.0
  %927 = vmatprep.subr.mxu0 0.0
  %928 = vmatpush1.msra.mxu0 0.0
  %929 = vmatprep.subr.mxu0 0.0
  %930 = vmatpush1.msra.mxu0 0.0
  %931 = vmatprep.subr.mxu0 0.0
  %932 = vmatpush1.msra.mxu0 0.0
  %933 = vmatprep.subr.mxu0 0.0
  %934 = vmatpush1.msra.mxu0 0.0
  %935 = vmatprep.subr.mxu0 0.0
  %936 = vmatpush1.msra.mxu0 0.0
  %937 = vmatprep.subr.mxu0 0.0
  %938 = vmatpush1.msra.mxu0 0.0
  %939 = vmatprep.subr.mxu0 0.0
  %940 = vmatpush1.msra.mxu0 0.0
  %941 = vmatprep.subr.mxu0 0.0
  %942 = vmatpush1.msra.mxu0 0.0
  %943 = vmatprep.subr.mxu0 0.0
  %944 = vmatpush1.msra.mxu0 0.0
  %945 = vmatprep.subr.mxu0 0.0
  %946 = vmatpush1.msra.mxu0 0.0
  %947 = vmatprep.subr.mxu0 0.0
  %948 = vmatpush1.msra.mxu0 0.0
  %949 = vmatprep.subr.mxu0 0.0
  %v950 = vand.u32 %v540, 4294901760
  %951 = vmatpush1.msra.mxu0 %v950
  %952 = vmatprep.subr.mxu0 0.0
  %953 = vmatpush2.msra.mxu0 0.0
  %954 = vmatprep.subr.mxu0 0.0
  %955 = vmatpush2.msra.mxu0 0.0
  %956 = vmatprep.subr.mxu0 0.0
  %957 = vmatpush2.msra.mxu0 0.0
  %958 = vmatprep.subr.mxu0 0.0
  %959 = vmatpush2.msra.mxu0 0.0
  %960 = vmatprep.subr.mxu0 0.0
  %961 = vmatpush2.msra.mxu0 0.0
  %962 = vmatprep.subr.mxu0 0.0
  %963 = vmatpush2.msra.mxu0 0.0
  %964 = vmatprep.subr.mxu0 0.0
  %965 = vmatpush2.msra.mxu0 0.0
  %966 = vmatprep.subr.mxu0 0.0
  %967 = vmatpush2.msra.mxu0 0.0
  %968 = vmatprep.subr.mxu0 0.0
  %969 = vmatpush2.msra.mxu0 0.0
  %970 = vmatprep.subr.mxu0 0.0
  %971 = vmatpush2.msra.mxu0 0.0
  %972 = vmatprep.subr.mxu0 0.0
  %973 = vmatpush2.msra.mxu0 0.0
  %974 = vmatprep.subr.mxu0 0.0
  %975 = vmatpush2.msra.mxu0 0.0
  %976 = vmatprep.subr.mxu0 0.0
  %977 = vmatpush2.msra.mxu0 0.0
  %978 = vmatprep.subr.mxu0 0.0
  %979 = vmatpush2.msra.mxu0 0.0
  %980 = vmatprep.subr.mxu0 0.0
  %981 = vmatpush2.msra.mxu0 0.0
  %982 = vmatprep.subr.mxu0 0.0
  %983 = vmatpush2.msra.mxu0 0.0
  %984 = vmatprep.mubr.f32.mxu0 0.0
  %v985 = vand.u32 %v543, 4294901760
  %986 = vmatmul.mubr.f32.gmra.mxu0 %v985
  %v987 = vpop.f32.mrf.mxu0
  %v988 = vadd.f32 %v916, %v987
  %v989 = vpop.f32.mrf.mxu0
  %990 = vdwg.mxu0
  %v991 = vand.u32 2147483647, %v988
  %vm992 = vcmp.le.f32.partialorder %v991, 0.7853982
  %vm993 = vcmp.lt.s32.totalorder %v988, 0
  %v994 = vand.u32 %v988, 2139095040
  %v995 = vshrl.u32 %v994, 23
  %v996 = vsub.s32 %v995, 127
  %v997 = vand.u32 2147483647, %v988
  %v998 = vand.u32 %v997, 8388607
  %v999 = vor.u32 %v998, 8388608
  %v1000 = vsub.s32 0, %v999
  %v1001 = vadd.s32 %v996, 1
  %vm1002 = vcmp.gt.s32.totalorder %v1001, 0
  %v1003 = vsel %vm1002, %v1001, 0
  %v1004 = vshrl.u32 %v1003, 5
  %v1005 = vand.u32 %v1003, 31
  %v1006 = vsub.s32 32, %v1005
  %v1007 = vshrl.u32 683565275, %v1006
  %v1008 = vshll.u32 683565275, %v1005
  %v1009 = vshrl.u32 2475754826, %v1006
  %v1010 = vor.u32 %v1008, %v1009
  %v1011 = vshll.u32 2475754826, %v1005
  %v1012 = vshrl.u32 2131351028, %v1006
  %v1013 = vor.u32 %v1011, %v1012
  %v1014 = vshll.u32 2131351028, %v1005
  %v1015 = vshrl.u32 2102212464, %v1006
  %v1016 = vor.u32 %v1014, %v1015
  %v1017 = vshll.u32 2102212464, %v1005
  %v1018 = vshrl.u32 920167782, %v1006
  %v1019 = vor.u32 %v1017, %v1018
  %v1020 = vshll.u32 920167782, %v1005
  %v1021 = vshrl.u32 1326507024, %v1006
  %v1022 = vor.u32 %v1020, %v1021
  %vm1023 = vcmp.lt.s32.totalorder %v1004, 1
  %vm1024 = vcmp.lt.s32.totalorder %v1004, 2
  %vm1025 = vcmp.lt.s32.totalorder %v1004, 3
  %vm1026 = vcmp.lt.s32.totalorder %v1004, 4
  %v1027 = vsel %vm1023, %v1007, %v1010
  %v1028 = vsel %vm1026, %v1016, 2102212464
  %v1029 = vsel %vm1025, %v1013, %v1028
  %v1030 = vsel %vm1024, %v1027, %v1029
  %v1031 = vsel %vm1023, %v1010, %v1013
  %v1032 = vsel %vm1026, %v1019, 920167782
  %v1033 = vsel %vm1025, %v1016, %v1032
  %v1034 = vsel %vm1024, %v1031, %v1033
  %v1035 = vsel %vm1023, %v1013, %v1016
  %v1036 = vsel %vm1026, %v1022, 1326507024
  %v1037 = vsel %vm1025, %v1019, %v1036
  %v1038 = vsel %vm1024, %v1035, %v1037
  %v1039 = vshll.u32 %v999, 8
  %v1040 = vmul.u32.u64.compose %v1039, %v1038
  %v1041 = vextract.low.u32 %v1040
  %v1042 = vextract.high.u32 %v1040
  %v1043 = vmul.u32.u64.compose %v1039, %v1034
  %v1044 = vextract.low.u32 %v1043
  %v1045 = vextract.high.u32 %v1043
  %v1046 = vmul.u32 %v1039, %v1030
  %v1047 = vadd.s32 %v1042, %v1044
  %vm1048 = vc.u32 %v1042, %v1044
  %v1049 = vadd.s32 %v1045, 1
  %v1050 = vsel %vm1048, %v1049, %v1045
  %v1051 = vadd.s32 %v1046, %v1050
  %v1052 = vadd.s32 %v1051, 536870912
  %v1053 = vshrl.u32 %v1052, 30
  %v1054 = vshll.u32 %v1053, 30
  %v1055 = vsub.s32 %v1051, %v1054
  %vm1056 = vcmp.lt.s32.totalorder %v1055, 0
  %v1057 = vsub.s32 0, %v1055
  %v1058 = vsel %vm1056, %v1057, %v1055
  %v1059 = vclz %v1058
  %v1060 = vsub.s32 %v1059, 2
  %vm1061 = vcmp.gt.s32.totalorder 0, %v1060
  %v1062 = vsel %vm1061, 0, %v1060
  %v1063 = vsub.s32 32, %v1062
  %v1064 = vshll.u32 %v1055, %v1062
  %v1065 = vshrl.u32 %v1047, %v1063
  %v1066 = vor.u32 %v1064, %v1065
  %v1067 = vsub.s32 4294967266, %v1062
  %v1068 = vadd.s32 %v1067, 127
  %v1069 = vshll.u32 %v1068, 23
  %v1070 = vor.u32 4788187, %v1069
  %v1071 = vand.u32 2147483647, %v1070
  %v1073 = vcvt.s32.f32 %v1066
  %v1074 = vmul.f32 %v1073, %v1071
  %v1075 = vxor.u32 %v1074, 2147483648
  %v1076 = vsel %vm993, %v1075, %v1074
  %v1077 = vsub.s32 4, %v1053
  %v1078 = vsel %vm993, %v1077, %v1053
  %v1079 = vsel %vm992, %v988, %v1076
  %v1080 = vsel %vm992, 0, %v1078
  %v1081 = vcosq.f32.pop %v1079
  %v1082 = vsinq.f32.pop %v1079
  %vm1083 = vweird.f32 %v988
  %v1084 = vadd.s32 %v1080, 3
  %v1085 = vand.u32 %v1084, 3
  %vm1086 = vcmp.lt.s32.totalorder %v1085, 2
  %vm1087 = vcmp.eq.s32.totalorder %v1085, 0
  %v1088 = vxor.u32 %v1082, 2147483648
  %v1089 = vsel %vm1087, %v1081, %v1088
  %vm1090 = vcmp.eq.s32.totalorder %v1085, 2
  %v1091 = vxor.u32 %v1081, 2147483648
  %v1092 = vsel %vm1090, %v1091, %v1082
  %v1093 = vsel %vm1086, %v1089, %v1092
  %v1094 = vsel %vm1083, nan, %v1093
  %v1095 = vadd.f32 %v538, %v1094
  %1096 = vst [vmem:[%s5] sm:$0xff] %v1095
  %p1097 = scmp.eq.s32.totalorder 0, 0
  // Predicated region
  $region22: #{event_sequence_encoder.1} parent=0 // pred_check
    %p1098 = pneg %p1097
  $region23: #{event_sequence_encoder.1} parent=0 // pred_check_branch
    %1100 = sbr.rel (%p1098) target = $region25
  $region24: #{event_sequence_encoder.1} parent=0 // pred_region
    %vm1101 = vcmask 253952
    %1102 = vst.msk [vmem:[%s5] sm:$0x1] %vm1101, %v538
  $region25: #{event_sequence_encoder.1} parent=0 // pred_fallthru
    _
  // Predicated region
  $region26: #{event_sequence_encoder.1} parent=0 // pred_check
    _
  $region27: #{event_sequence_encoder.1} parent=0 // pred_check_branch
    %1104 = sbr.rel (0) target = $region29
  $region28: #{event_sequence_encoder.1} parent=0 // pred_region
    _
  $region29: #{event_sequence_encoder.1} parent=0 // pred_fallthru
    _
  // Predicated region
  $region30: #{event_sequence_encoder.1} parent=0 // pred_check
    _
  $region31: #{event_sequence_encoder.1} parent=0 // pred_check_branch
    %1106 = sbr.rel (0) target = $region33
  $region32: #{event_sequence_encoder.1} parent=0 // pred_region
    _
  $region33: #{event_sequence_encoder.1} parent=0 // pred_fallthru
    _

</llo_original>
